<compile_context>
chip_gen: v7x
topology: tpu7x:2x2x1
jax: 0.10.0
libtpu: 0.0.40
codegen_flags: <defaults>
</compile_context>

<pallas_src>
import jax
import jax.numpy as jnp
from jax.experimental import pallas as pl
from jax.experimental.pallas import tpu as pltpu

_LANE = 128


def _mlp_kernel(x_ref, w1t_ref, b1_ref, w2t_ref, b2_ref, w3r_ref, b3_ref, o_ref):
    x = x_ref[...]                       # (IN, TB)   lane-dense batch tile
    w1t = w1t_ref[...]                   # (H, IN)

    # fc1 + ReLU: K is tiny (2), so use VPU broadcast-FMAs and keep the MXU
    # free for fc2/fc3.  (H,1) column * (1,TB) row -> (H,TB).
    h1 = b1_ref[...]                     # (H, 1), broadcasts over the lanes
    for k in range(w1t.shape[1]):        # static unroll (IN = 2)
        h1 = h1 + w1t[:, k:k + 1] * x[k:k + 1, :]
    h1 = jnp.maximum(h1, 0.0)            # (H, TB)

    # fc2 + ReLU: 64x64 MXU matmul against the lane-dense activation tile.
    # TODO(synk): on v6e/v7x a bf16 cast of (w2t, h1) would roughly double MXU
    # throughput; kept f32 here so the 1e-5 reference tolerance holds.
    h2 = jnp.dot(w2t_ref[...], h1, preferred_element_type=jnp.float32)
    h2 = jnp.maximum(h2 + b2_ref[...], 0.0)          # (H, TB)

    # fc3: (1,H) @ (H,TB) MXU matvec -> lane-dense (1, TB) output block.
    out = jnp.dot(w3r_ref[...], h2, preferred_element_type=jnp.float32)
    o_ref[...] = (out + b3_ref[...]).astype(o_ref.dtype)


def _round_up(n, m):
    return ((n + m - 1) // m) * m


def _cdiv(a, b):
    return -(-a // b)


def target_net_forward(x, params, *, block_batch=2048):
    """3-layer MLP forward pass (fc1-ReLU-fc2-ReLU-fc3) as one Pallas kernel.

    x:      (B, in_dim) float32
    params: dict with w1 (in,hid), b1 (1,hid), w2 (hid,hid), b2 (1,hid),
            w3 (hid,1), b3 (1,1)
    returns (B, 1) float32
    """
    w1, b1 = params["w1"], params["b1"]
    w2, b2 = params["w2"], params["b2"]
    w3, b3 = params["w3"], params["b3"]

    B, in_dim = x.shape
    hidden = w2.shape[0]
    out_dim = w3.shape[1]
    assert out_dim == 1, "fc3 matvec path assumes a single output unit"

    # Column/row-oriented parameter layouts for the batch-on-lanes kernel.
    w1t = w1.T                           # (H, IN)
    b1c = b1.reshape(hidden, 1)          # (H, 1)
    w2t = w2.T                           # (H, H)
    b2c = b2.reshape(hidden, 1)          # (H, 1)
    w3r = w3.reshape(1, hidden)          # (1, H)
    b3s = b3.reshape(1, 1)               # (1, 1)

    # --- batch tiling -------------------------------------------------------
    # Validate/round the requested tile to the lane granule, pick the number
    # of grid steps, make it even when >1 (v7x 2-TC balance), then shrink the
    # tile to minimize tail padding.
    bb = max(_LANE, _round_up(int(block_batch), _LANE))
    num_steps = _cdiv(B, bb)
    if num_steps > 1 and num_steps % 2 == 1:
        num_steps += 1                   # even grid count for v7x megacore
    tb = _round_up(_cdiv(B, num_steps), _LANE)
    b_pad = num_steps * tb

    xT = x.T                             # (IN, B) -> lane-dense batch axis
    if b_pad != B:
        xT = jnp.pad(xT, ((0, 0), (0, b_pad - B)))

    grid = (num_steps,)
    full = lambda a: pl.BlockSpec(a.shape, lambda i: (0,) * a.ndim)

    param_bytes = sum(int(a.size) * a.dtype.itemsize
                      for a in (w1t, b1c, w2t, b2c, w3r, b3s))
    cost = pl.CostEstimate(
        flops=2 * b_pad * (in_dim * hidden + hidden * hidden + hidden * out_dim),
        transcendentals=0,
        bytes_accessed=b_pad * in_dim * 4 + param_bytes + b_pad * out_dim * 4,
    )

    out = pl.pallas_call(
        _mlp_kernel,
        out_shape=jax.ShapeDtypeStruct((1, b_pad), jnp.float32),
        grid=grid,
        in_specs=[
            pl.BlockSpec((in_dim, tb), lambda i: (0, i)),   # streamed x tile
            full(w1t), full(b1c),
            full(w2t), full(b2c),
            full(w3r), full(b3s),
        ],
        out_specs=pl.BlockSpec((1, tb), lambda i: (0, i)),  # lane-dense store
        compiler_params=pltpu.CompilerParams(
            dimension_semantics=("parallel",)),
        cost_estimate=cost,
    )(xT, w1t, b1c, w2t, b2c, w3r, b3s)

    return out[0, :B].reshape(B, 1)


def init_params(key, in_dim=2, hidden=64, out_dim=1):
    """Deterministic init mirroring torch.nn.Linear default:
    U(-1/sqrt(fan_in), 1/sqrt(fan_in)) for both weights and biases."""
    ks = jax.random.split(key, 6)

    def linear(kw, kb, fan_in, fan_out):
        bound = 1.0 / jnp.sqrt(jnp.float32(fan_in))
        w = jax.random.uniform(kw, (fan_in, fan_out), jnp.float32, -bound, bound)
        b = jax.random.uniform(kb, (1, fan_out), jnp.float32, -bound, bound)
        return w, b

    w1, b1 = linear(ks[0], ks[1], in_dim, hidden)
    w2, b2 = linear(ks[2], ks[3], hidden, hidden)
    w3, b3 = linear(ks[4], ks[5], hidden, out_dim)
    return {"w1": w1, "b1": b1, "w2": w2, "b2": b2, "w3": w3, "b3": b3}


def _reference(x, p):
    h1 = jnp.maximum(x @ p["w1"] + p["b1"], 0.0)
    h2 = jnp.maximum(h1 @ p["w2"] + p["b2"], 0.0)
    return h2 @ p["w3"] + p["b3"]


if __name__ == "__main__":
    key = jax.random.PRNGKey(0)
    k_params, k_x1, k_x2, k_x3 = jax.random.split(key, 4)

    # MountainCar-v0 observation space has shape (2,): [position, velocity]
    in_dim, hidden, out_dim = 2, 64, 1
    params = init_params(k_params, in_dim, hidden, out_dim)

    # Small batch (single grid step, padded to one 128-lane tile).
    x_small = jax.random.normal(k_x1, (8, in_dim), jnp.float32)
    y_small = jax.block_until_ready(target_net_forward(x_small, params))
    assert y_small.shape == (8, out_dim), y_small.shape
    assert jnp.allclose(y_small, _reference(x_small, params), atol=1e-5, rtol=1e-5)

    # Non-divisible batch with a small tile: exercises padding plus a
    # multi-step (even-count) pipelined grid.
    x_mid = jax.random.normal(k_x2, (300, in_dim), jnp.float32)
    y_mid = jax.block_until_ready(target_net_forward(x_mid, params, block_batch=128))
    assert y_mid.shape == (300, out_dim), y_mid.shape
    assert jnp.allclose(y_mid, _reference(x_mid, params), atol=1e-5, rtol=1e-5)

    # Larger batch with the default (large) tile: single/low step count path.
    x_big = jax.random.normal(k_x3, (1000, in_dim), jnp.float32)
    y_big = jax.block_until_ready(target_net_forward(x_big, params))
    assert y_big.shape == (1000, out_dim), y_big.shape
    assert jnp.allclose(y_big, _reference(x_big, params), atol=1e-5, rtol=1e-5)

    print("KERNEL_OK")
</pallas_src>

<mosaic_0001>
module attributes {stable_mosaic.version = 11 : i64} {
  func.func @_mlp_kernel(%arg0: i32, %arg1: memref<2x128xf32, #tpu.memory_space<vmem>>, %arg2: memref<64x2xf32, #tpu.memory_space<vmem>>, %arg3: memref<64x1xf32, #tpu.memory_space<vmem>>, %arg4: memref<64x64xf32, #tpu.memory_space<vmem>>, %arg5: memref<64x1xf32, #tpu.memory_space<vmem>>, %arg6: memref<1x64xf32, #tpu.memory_space<vmem>>, %arg7: memref<1x1xf32, #tpu.memory_space<vmem>>, %arg8: memref<1x128xf32, #tpu.memory_space<vmem>>) attributes {dimension_semantics = [#tpu.dimension_semantics<parallel>], iteration_bounds = array<i64: 1>, scalar_prefetch = 0 : i64, scratch_operands = 0 : i64, tpu.core_type = #tpu.core_type<tc>, window_params = [{transform_indices = @transform_0, window_bounds = array<i64: 2, 128>}, {pipeline_mode = #tpu.pipeline_mode<synchronous>, transform_indices = @transform_1, window_bounds = array<i64: 64, 2>}, {pipeline_mode = #tpu.pipeline_mode<synchronous>, transform_indices = @transform_2, window_bounds = array<i64: 64, 1>}, {pipeline_mode = #tpu.pipeline_mode<synchronous>, transform_indices = @transform_3, window_bounds = array<i64: 64, 64>}, {pipeline_mode = #tpu.pipeline_mode<synchronous>, transform_indices = @transform_4, window_bounds = array<i64: 64, 1>}, {pipeline_mode = #tpu.pipeline_mode<synchronous>, transform_indices = @transform_5, window_bounds = array<i64: 1, 64>}, {pipeline_mode = #tpu.pipeline_mode<synchronous>, transform_indices = @transform_6, window_bounds = array<i64: 1, 1>}, {transform_indices = @transform_7, window_bounds = array<i64: 1, 128>}]} {
    %c0 = arith.constant 0 : index
    %c0_0 = arith.constant 0 : index
    %0 = vector.load %arg1[%c0, %c0_0] : memref<2x128xf32, #tpu.memory_space<vmem>>, vector<2x128xf32>
    %c0_1 = arith.constant 0 : index
    %c0_2 = arith.constant 0 : index
    %1 = vector.load %arg2[%c0_1, %c0_2] : memref<64x2xf32, #tpu.memory_space<vmem>>, vector<64x2xf32>
    %c0_3 = arith.constant 0 : index
    %c0_4 = arith.constant 0 : index
    %2 = vector.load %arg3[%c0_3, %c0_4] : memref<64x1xf32, #tpu.memory_space<vmem>>, vector<64x1xf32>
    %3 = vector.extract_strided_slice %1 {offsets = [0, 0], sizes = [64, 1], strides = [1, 1]} : vector<64x2xf32> to vector<64x1xf32>
    %4 = vector.extract_strided_slice %0 {offsets = [0, 0], sizes = [1, 128], strides = [1, 1]} : vector<2x128xf32> to vector<1x128xf32>
    %5 = vector.broadcast %3 : vector<64x1xf32> to vector<64x128xf32>
    %6 = vector.broadcast %4 : vector<1x128xf32> to vector<64x128xf32>
    %7 = arith.mulf %5, %6 : vector<64x128xf32>
    %8 = vector.broadcast %2 : vector<64x1xf32> to vector<64x128xf32>
    %9 = arith.addf %8, %7 : vector<64x128xf32>
    %10 = vector.extract_strided_slice %1 {offsets = [0, 1], sizes = [64, 1], strides = [1, 1]} : vector<64x2xf32> to vector<64x1xf32>
    %11 = vector.extract_strided_slice %0 {offsets = [1, 0], sizes = [1, 128], strides = [1, 1]} : vector<2x128xf32> to vector<1x128xf32>
    %12 = vector.broadcast %10 : vector<64x1xf32> to vector<64x128xf32>
    %13 = vector.broadcast %11 : vector<1x128xf32> to vector<64x128xf32>
    %14 = arith.mulf %12, %13 : vector<64x128xf32>
    %15 = arith.addf %9, %14 : vector<64x128xf32>
    %cst = arith.constant 0.000000e+00 : f32
    %16 = vector.broadcast %cst : f32 to vector<64x128xf32>
    %17 = arith.maximumf %15, %16 : vector<64x128xf32>
    %c0_5 = arith.constant 0 : index
    %c0_6 = arith.constant 0 : index
    %18 = vector.load %arg4[%c0_5, %c0_6] : memref<64x64xf32, #tpu.memory_space<vmem>>, vector<64x64xf32>
    %cst_7 = arith.constant dense<0.000000e+00> : vector<64x128xf32>
    %19 = tpu.matmul %18, %17, %cst_7 {dimension_numbers = #tpu.dot_dimension_numbers<[1], [0], [0], [1], [0, 0, 1, 1], [], []>} : vector<64x64xf32>, vector<64x128xf32>, vector<64x128xf32> -> vector<64x128xf32>
    %c0_8 = arith.constant 0 : index
    %c0_9 = arith.constant 0 : index
    %20 = vector.load %arg5[%c0_8, %c0_9] : memref<64x1xf32, #tpu.memory_space<vmem>>, vector<64x1xf32>
    %21 = vector.broadcast %20 : vector<64x1xf32> to vector<64x128xf32>
    %22 = arith.addf %19, %21 : vector<64x128xf32>
    %cst_10 = arith.constant 0.000000e+00 : f32
    %23 = vector.broadcast %cst_10 : f32 to vector<64x128xf32>
    %24 = arith.maximumf %22, %23 : vector<64x128xf32>
    %c0_11 = arith.constant 0 : index
    %c0_12 = arith.constant 0 : index
    %25 = vector.load %arg6[%c0_11, %c0_12] : memref<1x64xf32, #tpu.memory_space<vmem>>, vector<1x64xf32>
    %cst_13 = arith.constant dense<0.000000e+00> : vector<1x128xf32>
    %26 = tpu.matmul %25, %24, %cst_13 {dimension_numbers = #tpu.dot_dimension_numbers<[1], [0], [0], [1], [0, 0, 1, 1], [], []>} : vector<1x64xf32>, vector<64x128xf32>, vector<1x128xf32> -> vector<1x128xf32>
    %c0_14 = arith.constant 0 : index
    %c0_15 = arith.constant 0 : index
    %27 = vector.load %arg7[%c0_14, %c0_15] : memref<1x1xf32, #tpu.memory_space<vmem>>, vector<1x1xf32>
    %28 = vector.broadcast %27 : vector<1x1xf32> to vector<1x128xf32>
    %29 = arith.addf %26, %28 : vector<1x128xf32>
    %c0_16 = arith.constant 0 : index
    %c0_17 = arith.constant 0 : index
    %30 = vector.load %arg8[%c0_16, %c0_17] : memref<1x128xf32, #tpu.memory_space<vmem>>, vector<1x128xf32>
    tpu.vector_store %arg8[%c0_16, %c0_17], %29 {strides = array<i32>} : memref<1x128xf32, #tpu.memory_space<vmem>>, vector<1x128xf32>,
    return
  }
  func.func @transform_0(%arg0: i32) -> (i32, i32) {
    %c0_i32 = arith.constant 0 : i32
    %c0_i32_0 = arith.constant 0 : i32
    return %c0_i32, %arg0 : i32, i32
  }
  func.func @transform_1(%arg0: i32) -> (i32, i32) {
    %c0_i32 = arith.constant 0 : i32
    %c0_i32_0 = arith.constant 0 : i32
    %c0_i32_1 = arith.constant 0 : i32
    return %c0_i32, %c0_i32_0 : i32, i32
  }
  func.func @transform_2(%arg0: i32) -> (i32, i32) {
    %c0_i32 = arith.constant 0 : i32
    %c0_i32_0 = arith.constant 0 : i32
    %c0_i32_1 = arith.constant 0 : i32
    return %c0_i32, %c0_i32_0 : i32, i32
  }
  func.func @transform_3(%arg0: i32) -> (i32, i32) {
    %c0_i32 = arith.constant 0 : i32
    %c0_i32_0 = arith.constant 0 : i32
    %c0_i32_1 = arith.constant 0 : i32
    return %c0_i32, %c0_i32_0 : i32, i32
  }
  func.func @transform_4(%arg0: i32) -> (i32, i32) {
    %c0_i32 = arith.constant 0 : i32
    %c0_i32_0 = arith.constant 0 : i32
    %c0_i32_1 = arith.constant 0 : i32
    return %c0_i32, %c0_i32_0 : i32, i32
  }
  func.func @transform_5(%arg0: i32) -> (i32, i32) {
    %c0_i32 = arith.constant 0 : i32
    %c0_i32_0 = arith.constant 0 : i32
    %c0_i32_1 = arith.constant 0 : i32
    return %c0_i32, %c0_i32_0 : i32, i32
  }
  func.func @transform_6(%arg0: i32) -> (i32, i32) {
    %c0_i32 = arith.constant 0 : i32
    %c0_i32_0 = arith.constant 0 : i32
    %c0_i32_1 = arith.constant 0 : i32
    return %c0_i32, %c0_i32_0 : i32, i32
  }
  func.func @transform_7(%arg0: i32) -> (i32, i32) {
    %c0_i32 = arith.constant 0 : i32
    %c0_i32_0 = arith.constant 0 : i32
    return %c0_i32, %arg0 : i32, i32
  }
}

</mosaic_0001>

<llo_original>
// kernel: tpu_custom_call.1
$region0: #{tpu_custom_call.1}
  #allocation0 [shape = 'u32[]', space=smem, size = 0x4, offset = 0x4, fixed_abs, tag = 'smem constant byte address 0x4 - core index']
  #allocation1 [shape = 'u32[144,128]{1,0:T(1,128)}', space=vmem, size = 0x12000, scoped, tag = 'internal scratch']
  #allocation2 [shape = 'f32[1,1]{1,0:T(1,128)S(1)}', space=vmem, size = 0x200, scoped, tag = 'scoped memory for tpu_custom_call.1']
  %s0 = inlined_call_operand.vmem [shape: f32[2,128], index: 0, kind: input, shape index: {}]
  %s1 = inlined_call_operand.vmem [shape: f32[64,2], index: 1, kind: input, shape index: {}]
  %s2 = inlined_call_operand.vmem [shape: f32[64,1], index: 2, kind: input, shape index: {}]
  %s3 = inlined_call_operand.vmem [shape: f32[64,64], index: 3, kind: input, shape index: {}]
  %s4 = inlined_call_operand.vmem [shape: f32[64,1], index: 4, kind: input, shape index: {}]
  %s5 = inlined_call_operand.vmem [shape: f32[1,64], index: 5, kind: input, shape index: {}]
  %s6 = inlined_call_operand.<no memory space> [shape: f32[1,1], index: 6, kind: input, shape index: {}]
  %s7 = inlined_call_operand.hbm [shape: f32[1,128], index: 7, kind: output, shape index: {}]
  %s8 = sld [smem:[#allocation0]]
  $region38: #{tpu_custom_call.1} parent=0
    _
  %s10 = ssub.s32 1, %s8
  %s11 = scalar_select 0, %s10, %s8
  %v12 = vstv %s6
  %13 = vst [vmem:[#allocation2] sm:$0x1] %v12
  $region1: #{tpu_custom_call.1} parent=0
    #allocation3 [shape = 'u8[512]{0}', space=vmem, size = 0x400, scoped, tag = 'output window, operand 0, single buffered']
    #allocation4 [shape = 's32[1]{0}', space=sflag, size = 0x4, scoped, tag = 'scoped memory for tpu_custom_call.1']
    %14 = vsyncpa [#allocation4], 0
    // Predicated region
    $region2: #{tpu_custom_call.1} parent=1 // pred_check
      _
    $region3: #{tpu_custom_call.1} parent=1 // pred_check_branch
      %16 = sbr.rel (0) target = $region5
    $region4: #{tpu_custom_call.1} parent=1 // pred_region
      _
    $region5: #{tpu_custom_call.1} parent=1 // pred_fallthru
      _
    // Predicated region
    $region6: #{tpu_custom_call.1} parent=1 // pred_check
      _
    $region7: #{tpu_custom_call.1} parent=1 // pred_check_branch
      %18 = sbr.rel (0) target = $region9
    $region8: #{tpu_custom_call.1} parent=1 // pred_region
      _
    $region9: #{tpu_custom_call.1} parent=1 // pred_fallthru
      _
    // Predicated region
    $region10: #{tpu_custom_call.1} parent=1 // pred_check
      _
    $region11: #{tpu_custom_call.1} parent=1 // pred_check_branch
      %20 = sbr.rel (0) target = $region13
    $region12: #{tpu_custom_call.1} parent=1 // pred_region
      _
    $region13: #{tpu_custom_call.1} parent=1 // pred_fallthru
      _
    // Predicated region
    $region14: #{tpu_custom_call.1} parent=1 // pred_check
      _
    $region15: #{tpu_custom_call.1} parent=1 // pred_check_branch
      %22 = sbr.rel (0) target = $region17
    $region16: #{tpu_custom_call.1} parent=1 // pred_region
      _
    $region17: #{tpu_custom_call.1} parent=1 // pred_fallthru
      _
    // Predicated region
    $region18: #{tpu_custom_call.1} parent=1 // pred_check
      _
    $region19: #{tpu_custom_call.1} parent=1 // pred_check_branch
      %24 = sbr.rel (0) target = $region21
    $region20: #{tpu_custom_call.1} parent=1 // pred_region
      _
    $region21: #{tpu_custom_call.1} parent=1 // pred_fallthru
      _
    // Predicated region
    $region22: #{tpu_custom_call.1} parent=1 // pred_check
      _
    $region23: #{tpu_custom_call.1} parent=1 // pred_check_branch
      %26 = sbr.rel (0) target = $region25
    $region24: #{tpu_custom_call.1} parent=1 // pred_region
      _
    $region25: #{tpu_custom_call.1} parent=1 // pred_fallthru
      _
    // Predicated region
    $region26: #{tpu_custom_call.1} parent=1 // pred_check
      _
    $region27: #{tpu_custom_call.1} parent=1 // pred_check_branch
      %28 = sbr.rel (0) target = $region29
    $region28: #{tpu_custom_call.1} parent=1 // pred_region
      _
    $region29: #{tpu_custom_call.1} parent=1 // pred_fallthru
      _
    %v29 = vld [vmem:[%s0] sm:$0x3]
    %v30 = vld [vmem:[%s1] sm:$0xff]
    %v31 = vld [vmem:[%s1 + $0x8] sm:$0xff]
    %v32 = vld [vmem:[%s1 + $0x10] sm:$0xff]
    %v33 = vld [vmem:[%s1 + $0x18] sm:$0xff]
    %v34 = vld [vmem:[%s1 + $0x20] sm:$0xff]
    %v35 = vld [vmem:[%s1 + $0x28] sm:$0xff]
    %v36 = vld [vmem:[%s1 + $0x30] sm:$0xff]
    %v37 = vld [vmem:[%s1 + $0x38] sm:$0xff]
    %v38 = vld [vmem:[%s2] sm:$0xff]
    %v39 = vld [vmem:[%s2 + $0x8] sm:$0xff]
    %v40 = vld [vmem:[%s2 + $0x10] sm:$0xff]
    %v41 = vld [vmem:[%s2 + $0x18] sm:$0xff]
    %v42 = vld [vmem:[%s2 + $0x20] sm:$0xff]
    %v43 = vld [vmem:[%s2 + $0x28] sm:$0xff]
    %v44 = vld [vmem:[%s2 + $0x30] sm:$0xff]
    %v45 = vld [vmem:[%s2 + $0x38] sm:$0xff]
    %47 = vset.pattern.permute.xlu0 0
    %48 = vperm.xlu0 %47, %v30
    %v49 = vpop.permute.xlu0 %48
    %52 = vset.pattern.permute.xlu0 0
    %53 = vperm.xlu0 %52, %v31
    %v54 = vpop.permute.xlu0 %53
    %57 = vset.pattern.permute.xlu0 0
    %58 = vperm.xlu0 %57, %v32
    %v59 = vpop.permute.xlu0 %58
    %62 = vset.pattern.permute.xlu0 0
    %63 = vperm.xlu0 %62, %v33
    %v64 = vpop.permute.xlu0 %63
    %67 = vset.pattern.permute.xlu0 0
    %68 = vperm.xlu0 %67, %v34
    %v69 = vpop.permute.xlu0 %68
    %72 = vset.pattern.permute.xlu0 0
    %73 = vperm.xlu0 %72, %v35
    %v74 = vpop.permute.xlu0 %73
    %77 = vset.pattern.permute.xlu0 0
    %78 = vperm.xlu0 %77, %v36
    %v79 = vpop.permute.xlu0 %78
    %82 = vset.pattern.permute.xlu0 0
    %83 = vperm.xlu0 %82, %v37
    %v84 = vpop.permute.xlu0 %83
    %v86 = vlaneseq
    %v87 = vshrl.u32 %v86, 7
    %v88 = vsub.s32 0, %v87
    %v89 = vrot.slane %v29, %v88
    %v90 = vmul.f32 %v49, %v89
    %v91 = vmul.f32 %v54, %v89
    %v92 = vmul.f32 %v59, %v89
    %v93 = vmul.f32 %v64, %v89
    %v94 = vmul.f32 %v69, %v89
    %v95 = vmul.f32 %v74, %v89
    %v96 = vmul.f32 %v79, %v89
    %v97 = vmul.f32 %v84, %v89
    %99 = vset.pattern.permute.xlu0 0
    %100 = vperm.xlu0 %99, %v38
    %v101 = vpop.permute.xlu0 %100
    %104 = vset.pattern.permute.xlu0 0
    %105 = vperm.xlu0 %104, %v39
    %v106 = vpop.permute.xlu0 %105
    %109 = vset.pattern.permute.xlu0 0
    %110 = vperm.xlu0 %109, %v40
    %v111 = vpop.permute.xlu0 %110
    %114 = vset.pattern.permute.xlu0 0
    %115 = vperm.xlu0 %114, %v41
    %v116 = vpop.permute.xlu0 %115
    %119 = vset.pattern.permute.xlu0 0
    %120 = vperm.xlu0 %119, %v42
    %v121 = vpop.permute.xlu0 %120
    %124 = vset.pattern.permute.xlu0 0
    %125 = vperm.xlu0 %124, %v43
    %v126 = vpop.permute.xlu0 %125
    %129 = vset.pattern.permute.xlu0 0
    %130 = vperm.xlu0 %129, %v44
    %v131 = vpop.permute.xlu0 %130
    %134 = vset.pattern.permute.xlu0 0
    %135 = vperm.xlu0 %134, %v45
    %v136 = vpop.permute.xlu0 %135
    %v138 = vadd.f32 %v101, %v90
    %v139 = vadd.f32 %v106, %v91
    %v140 = vadd.f32 %v111, %v92
    %v141 = vadd.f32 %v116, %v93
    %v142 = vadd.f32 %v121, %v94
    %v143 = vadd.f32 %v126, %v95
    %v144 = vadd.f32 %v131, %v96
    %v145 = vadd.f32 %v136, %v97
    %146 = vset.pattern.permute.xlu0 1
    %147 = vperm.xlu0 %146, %v30
    %v148 = vpop.permute.xlu0 %147
    %150 = vset.pattern.permute.xlu0 1
    %151 = vperm.xlu0 %150, %v31
    %v152 = vpop.permute.xlu0 %151
    %154 = vset.pattern.permute.xlu0 1
    %155 = vperm.xlu0 %154, %v32
    %v156 = vpop.permute.xlu0 %155
    %158 = vset.pattern.permute.xlu0 1
    %159 = vperm.xlu0 %158, %v33
    %v160 = vpop.permute.xlu0 %159
    %162 = vset.pattern.permute.xlu0 1
    %163 = vperm.xlu0 %162, %v34
    %v164 = vpop.permute.xlu0 %163
    %166 = vset.pattern.permute.xlu0 1
    %167 = vperm.xlu0 %166, %v35
    %v168 = vpop.permute.xlu0 %167
    %170 = vset.pattern.permute.xlu0 1
    %171 = vperm.xlu0 %170, %v36
    %v172 = vpop.permute.xlu0 %171
    %174 = vset.pattern.permute.xlu0 1
    %175 = vperm.xlu0 %174, %v37
    %v176 = vpop.permute.xlu0 %175
    %v178 = vlaneseq
    %v179 = vshrl.u32 %v178, 7
    %v180 = vsub.s32 1, %v179
    %v181 = vrot.slane %v29, %v180
    %v182 = vmul.f32 %v148, %v181
    %v183 = vmul.f32 %v152, %v181
    %v184 = vmul.f32 %v156, %v181
    %v185 = vmul.f32 %v160, %v181
    %v186 = vmul.f32 %v164, %v181
    %v187 = vmul.f32 %v168, %v181
    %v188 = vmul.f32 %v172, %v181
    %v189 = vmul.f32 %v176, %v181
    %v190 = vadd.f32 %v138, %v182
    %v191 = vadd.f32 %v139, %v183
    %v192 = vadd.f32 %v140, %v184
    %v193 = vadd.f32 %v141, %v185
    %v194 = vadd.f32 %v142, %v186
    %v195 = vadd.f32 %v143, %v187
    %v196 = vadd.f32 %v144, %v188
    %v197 = vadd.f32 %v145, %v189
    %v198 = vmax.f32 %v190, 0.0
    %v199 = vmax.f32 %v191, 0.0
    %v200 = vmax.f32 %v192, 0.0
    %v201 = vmax.f32 %v193, 0.0
    %v202 = vmax.f32 %v194, 0.0
    %v203 = vmax.f32 %v195, 0.0
    %v204 = vmax.f32 %v196, 0.0
    %v205 = vmax.f32 %v197, 0.0
    %v206 = vld [vmem:[%s3] sm:$0xff]
    %v207 = vld [vmem:[%s3 + $0x8] sm:$0xff]
    %v208 = vld [vmem:[%s3 + $0x10] sm:$0xff]
    %v209 = vld [vmem:[%s3 + $0x18] sm:$0xff]
    %v210 = vld [vmem:[%s3 + $0x20] sm:$0xff]
    %v211 = vld [vmem:[%s3 + $0x28] sm:$0xff]
    %v212 = vld [vmem:[%s3 + $0x30] sm:$0xff]
    %v213 = vld [vmem:[%s3 + $0x38] sm:$0xff]
    %v214 = vld [vmem:[%s4] sm:$0xff]
    %v215 = vld [vmem:[%s4 + $0x8] sm:$0xff]
    %v216 = vld [vmem:[%s4 + $0x10] sm:$0xff]
    %v217 = vld [vmem:[%s4 + $0x18] sm:$0xff]
    %v218 = vld [vmem:[%s4 + $0x20] sm:$0xff]
    %v219 = vld [vmem:[%s4 + $0x28] sm:$0xff]
    %v220 = vld [vmem:[%s4 + $0x30] sm:$0xff]
    %v221 = vld [vmem:[%s4 + $0x38] sm:$0xff]
    %223 = vset.pattern.permute.xlu0 0
    %224 = vperm.xlu0 %223, %v214
    %v225 = vpop.permute.xlu0 %224
    %228 = vset.pattern.permute.xlu0 0
    %229 = vperm.xlu0 %228, %v215
    %v230 = vpop.permute.xlu0 %229
    %233 = vset.pattern.permute.xlu0 0
    %234 = vperm.xlu0 %233, %v216
    %v235 = vpop.permute.xlu0 %234
    %238 = vset.pattern.permute.xlu0 0
    %239 = vperm.xlu0 %238, %v217
    %v240 = vpop.permute.xlu0 %239
    %243 = vset.pattern.permute.xlu0 0
    %244 = vperm.xlu0 %243, %v218
    %v245 = vpop.permute.xlu0 %244
    %248 = vset.pattern.permute.xlu0 0
    %249 = vperm.xlu0 %248, %v219
    %v250 = vpop.permute.xlu0 %249
    %253 = vset.pattern.permute.xlu0 0
    %254 = vperm.xlu0 %253, %v220
    %v255 = vpop.permute.xlu0 %254
    %258 = vset.pattern.permute.xlu0 0
    %259 = vperm.xlu0 %258, %v221
    %v260 = vpop.permute.xlu0 %259
    %vm262 = vcmask 523264
    %v264 = vsel %vm262, %v206, 0
    %v267 = vsel %vm262, %v207, 0
    %v270 = vsel %vm262, %v208, 0
    %v273 = vsel %vm262, %v209, 0
    %v276 = vsel %vm262, %v210, 0
    %v279 = vsel %vm262, %v211, 0
    %v282 = vsel %vm262, %v212, 0
    %v285 = vsel %vm262, %v213, 0
    %287 = vmatprep.subr.mxu0 0.0
    %288 = vmatpush1.msra.mxu0 %v198
    %289 = vmatprep.subr.mxu0 0.0
    %290 = vmatpush1.msra.mxu0 %v199
    %291 = vmatprep.subr.mxu0 0.0
    %292 = vmatpush1.msra.mxu0 %v200
    %293 = vmatprep.subr.mxu0 0.0
    %294 = vmatpush1.msra.mxu0 %v201
    %295 = vmatprep.subr.mxu0 0.0
    %296 = vmatpush1.msra.mxu0 %v202
    %297 = vmatprep.subr.mxu0 0.0
    %298 = vmatpush1.msra.mxu0 %v203
    %299 = vmatprep.subr.mxu0 0.0
    %300 = vmatpush1.msra.mxu0 %v204
    %301 = vmatprep.subr.mxu0 0.0
    %302 = vmatpush1.msra.mxu0 %v205
    %303 = vmatprep.subr.mxu0 0.0
    %304 = vmatpush1.msra.mxu0 0.0
    %305 = vmatprep.subr.mxu0 0.0
    %306 = vmatpush1.msra.mxu0 0.0
    %307 = vmatprep.subr.mxu0 0.0
    %308 = vmatpush1.msra.mxu0 0.0
    %309 = vmatprep.subr.mxu0 0.0
    %310 = vmatpush1.msra.mxu0 0.0
    %311 = vmatprep.subr.mxu0 0.0
    %312 = vmatpush1.msra.mxu0 0.0
    %313 = vmatprep.subr.mxu0 0.0
    %314 = vmatpush1.msra.mxu0 0.0
    %315 = vmatprep.subr.mxu0 0.0
    %316 = vmatpush1.msra.mxu0 0.0
    %317 = vmatprep.subr.mxu0 0.0
    %318 = vmatpush1.msra.mxu0 0.0
    %319 = vmatprep.subr.mxu0 0.0
    %320 = vmatpush1.msra.mxu0 0.0
    %321 = vmatprep.subr.mxu0 0.0
    %322 = vmatpush1.msra.mxu0 0.0
    %323 = vmatprep.subr.mxu0 0.0
    %324 = vmatpush1.msra.mxu0 0.0
    %325 = vmatprep.subr.mxu0 0.0
    %326 = vmatpush1.msra.mxu0 0.0
    %327 = vmatprep.subr.mxu0 0.0
    %328 = vmatpush1.msra.mxu0 0.0
    %329 = vmatprep.subr.mxu0 0.0
    %330 = vmatpush1.msra.mxu0 0.0
    %331 = vmatprep.subr.mxu0 0.0
    %332 = vmatpush1.msra.mxu0 0.0
    %333 = vmatprep.subr.mxu0 0.0
    %334 = vmatpush1.msra.mxu0 0.0
    %335 = vmatprep.subr.mxu0 0.0
    %336 = vmatpush1.msra.mxu0 0.0
    %337 = vmatprep.subr.mxu0 0.0
    %338 = vmatpush1.msra.mxu0 0.0
    %339 = vmatprep.subr.mxu0 0.0
    %340 = vmatpush1.msra.mxu0 0.0
    %341 = vmatprep.subr.mxu0 0.0
    %342 = vmatpush1.msra.mxu0 0.0
    %343 = vmatprep.subr.mxu0 0.0
    %344 = vmatpush1.msra.mxu0 0.0
    %345 = vmatprep.subr.mxu0 0.0
    %346 = vmatpush1.msra.mxu0 0.0
    %347 = vmatprep.subr.mxu0 0.0
    %348 = vmatpush1.msra.mxu0 0.0
    %349 = vmatprep.subr.mxu0 0.0
    %350 = vmatpush1.msra.mxu0 0.0
    %351 = vmatprep.mubr.f32.mxu0 0.0
    %352 = vmatmul.mubr.f32.gmra.mrb[0].mxu0 %v264
    %v353 = vpop.f32.mrb[0].mxu0
    %v354 = vadd.f32 %v225, %v353
    %v355 = vpop.f32.mrb[0].mxu0
    %356 = vmatprep.mubr.f32.mxu0 0.0
    %357 = vmatmul.mubr.f32.gmra.mrb[0].mxu0 %v267
    %v358 = vpop.f32.mrb[0].mxu0
    %v359 = vadd.f32 %v230, %v358
    %v360 = vpop.f32.mrb[0].mxu0
    %361 = vmatprep.mubr.f32.mxu0 0.0
    %362 = vmatmul.mubr.f32.gmra.mrb[0].mxu0 %v270
    %v363 = vpop.f32.mrb[0].mxu0
    %v364 = vadd.f32 %v235, %v363
    %v365 = vpop.f32.mrb[0].mxu0
    %366 = vmatprep.mubr.f32.mxu0 0.0
    %367 = vmatmul.mubr.f32.gmra.mrb[0].mxu0 %v273
    %v368 = vpop.f32.mrb[0].mxu0
    %v369 = vadd.f32 %v240, %v368
    %v370 = vpop.f32.mrb[0].mxu0
    %371 = vmatprep.mubr.f32.mxu0 0.0
    %372 = vmatmul.mubr.f32.gmra.mrb[0].mxu0 %v276
    %v373 = vpop.f32.mrb[0].mxu0
    %v374 = vadd.f32 %v245, %v373
    %v375 = vpop.f32.mrb[0].mxu0
    %376 = vmatprep.mubr.f32.mxu0 0.0
    %377 = vmatmul.mubr.f32.gmra.mrb[0].mxu0 %v279
    %v378 = vpop.f32.mrb[0].mxu0
    %v379 = vadd.f32 %v250, %v378
    %v380 = vpop.f32.mrb[0].mxu0
    %381 = vmatprep.mubr.f32.mxu0 0.0
    %382 = vmatmul.mubr.f32.gmra.mrb[0].mxu0 %v282
    %v383 = vpop.f32.mrb[0].mxu0
    %v384 = vadd.f32 %v255, %v383
    %v385 = vpop.f32.mrb[0].mxu0
    %386 = vmatprep.mubr.f32.mxu0 0.0
    %387 = vmatmul.mubr.f32.gmra.mrb[0].mxu0 %v285
    %v388 = vpop.f32.mrb[0].mxu0
    %v389 = vadd.f32 %v260, %v388
    %v390 = vpop.f32.mrb[0].mxu0
    %391 = vdwg.mxu0
    %v392 = vmax.f32 %v354, 0.0
    %v393 = vmax.f32 %v359, 0.0
    %v394 = vmax.f32 %v364, 0.0
    %v395 = vmax.f32 %v369, 0.0
    %v396 = vmax.f32 %v374, 0.0
    %v397 = vmax.f32 %v379, 0.0
    %v398 = vmax.f32 %v384, 0.0
    %v399 = vmax.f32 %v389, 0.0
    %v400 = vld [vmem:[%s5] sm:$0x1]
    %v401 = vld [vmem:[#allocation2] sm:$0x1]
    %403 = vset.pattern.permute.xlu0 0
    %404 = vperm.xlu0 %403, %v401
    %v405 = vpop.permute.xlu0 %404
    %v407 = vlaneseq
    %v408 = vshrl.u32 %v407, 7
    %v409 = vsub.s32 0, %v408
    %v410 = vrot.slane %v405, %v409
    %v412 = vsel %vm262, %v400, 0
    %414 = vmatprep.subr.mxu0 0.0
    %415 = vmatpush1.msra.mxu0 %v392
    %416 = vmatprep.subr.mxu0 0.0
    %417 = vmatpush1.msra.mxu0 %v393
    %418 = vmatprep.subr.mxu0 0.0
    %419 = vmatpush1.msra.mxu0 %v394
    %420 = vmatprep.subr.mxu0 0.0
    %421 = vmatpush1.msra.mxu0 %v395
    %422 = vmatprep.subr.mxu0 0.0
    %423 = vmatpush1.msra.mxu0 %v396
    %424 = vmatprep.subr.mxu0 0.0
    %425 = vmatpush1.msra.mxu0 %v397
    %426 = vmatprep.subr.mxu0 0.0
    %427 = vmatpush1.msra.mxu0 %v398
    %428 = vmatprep.subr.mxu0 0.0
    %429 = vmatpush1.msra.mxu0 %v399
    %430 = vmatprep.subr.mxu0 0.0
    %431 = vmatpush1.msra.mxu0 0.0
    %432 = vmatprep.subr.mxu0 0.0
    %433 = vmatpush1.msra.mxu0 0.0
    %434 = vmatprep.subr.mxu0 0.0
    %435 = vmatpush1.msra.mxu0 0.0
    %436 = vmatprep.subr.mxu0 0.0
    %437 = vmatpush1.msra.mxu0 0.0
    %438 = vmatprep.subr.mxu0 0.0
    %439 = vmatpush1.msra.mxu0 0.0
    %440 = vmatprep.subr.mxu0 0.0
    %441 = vmatpush1.msra.mxu0 0.0
    %442 = vmatprep.subr.mxu0 0.0
    %443 = vmatpush1.msra.mxu0 0.0
    %444 = vmatprep.subr.mxu0 0.0
    %445 = vmatpush1.msra.mxu0 0.0
    %446 = vmatprep.subr.mxu0 0.0
    %447 = vmatpush1.msra.mxu0 0.0
    %448 = vmatprep.subr.mxu0 0.0
    %449 = vmatpush1.msra.mxu0 0.0
    %450 = vmatprep.subr.mxu0 0.0
    %451 = vmatpush1.msra.mxu0 0.0
    %452 = vmatprep.subr.mxu0 0.0
    %453 = vmatpush1.msra.mxu0 0.0
    %454 = vmatprep.subr.mxu0 0.0
    %455 = vmatpush1.msra.mxu0 0.0
    %456 = vmatprep.subr.mxu0 0.0
    %457 = vmatpush1.msra.mxu0 0.0
    %458 = vmatprep.subr.mxu0 0.0
    %459 = vmatpush1.msra.mxu0 0.0
    %460 = vmatprep.subr.mxu0 0.0
    %461 = vmatpush1.msra.mxu0 0.0
    %462 = vmatprep.subr.mxu0 0.0
    %463 = vmatpush1.msra.mxu0 0.0
    %464 = vmatprep.subr.mxu0 0.0
    %465 = vmatpush1.msra.mxu0 0.0
    %466 = vmatprep.subr.mxu0 0.0
    %467 = vmatpush1.msra.mxu0 0.0
    %468 = vmatprep.subr.mxu0 0.0
    %469 = vmatpush1.msra.mxu0 0.0
    %470 = vmatprep.subr.mxu0 0.0
    %471 = vmatpush1.msra.mxu0 0.0
    %472 = vmatprep.subr.mxu0 0.0
    %473 = vmatpush1.msra.mxu0 0.0
    %474 = vmatprep.subr.mxu0 0.0
    %475 = vmatpush1.msra.mxu0 0.0
    %476 = vmatprep.subr.mxu0 0.0
    %477 = vmatpush1.msra.mxu0 0.0
    %478 = vmatprep.mubr.f32.mxu0 0.0
    %479 = vmatmul.mubr.f32.gmra.mrb[0].mxu0 %v412
    %v480 = vpop.f32.mrb[0].mxu0
    %v481 = vadd.f32 %v410, %v480
    %v482 = vpop.f32.mrb[0].mxu0
    %483 = vdwg.mxu0
    %484 = vst [vmem:[#allocation3] sm:$0x1] %v481
    // Predicated region
    $region30: #{tpu_custom_call.1} parent=1 // pred_check
      _
    $region31: #{tpu_custom_call.1} parent=1 // pred_check_branch
      %486 = sbr.rel (0) target = $region33
    $region32: #{tpu_custom_call.1} parent=1 // pred_region
      %s488 = ssub.s32 16, 16
      %489 = vsyncadd [#allocation4], %s488
      %s491 = sshll.u32 [#allocation3], 4
      %s492 = int_to_ptr.vmem [resolvable:$true] %s491
      %494 = dma.vmem_to_hbm [thread:$0]  %s492, 16, %s7, [#allocation4]
    $region33: #{tpu_custom_call.1} parent=1 // pred_fallthru
      _
    // Predicated region
    $region34: #{tpu_custom_call.1} parent=1 // pred_check
      _
    $region35: #{tpu_custom_call.1} parent=1 // pred_check_branch
      %496 = sbr.rel (0) target = $region37
    $region36: #{tpu_custom_call.1} parent=1 // pred_region
      %497 = dma.done [#allocation4], 16
    $region37: #{tpu_custom_call.1} parent=1 // pred_fallthru
      _
    %498 = vsyncpa [#allocation4], 1

</llo_original>
